<compile_context>
chip_gen: v7x
topology: tpu7x:2x2x1
jax: 0.10.0
libtpu: 0.0.40
codegen_flags: <defaults>
</compile_context>

<pallas_src>
import math
import functools

import jax
import jax.numpy as jnp
from jax import lax
from jax.experimental import pallas as pl
from jax.experimental.pallas import tpu as pltpu


def _pick_tile(dim, candidates, multiple_of=1):
    """Largest candidate tile dividing `dim` (and a multiple of `multiple_of`);
    falls back to the full dim, which is always a legal block shape."""
    for c in candidates:
        if dim >= c and dim % c == 0 and c % multiple_of == 0:
            return c
    return dim


def _deinterleave_perm(num_heads, dim_head):
    """Column permutation so each head's q/k columns become [even dims | odd dims]."""
    base = jnp.concatenate([jnp.arange(0, dim_head, 2), jnp.arange(1, dim_head, 2)])
    return (jnp.arange(num_heads)[:, None] * dim_head + base[None, :]).reshape(-1)


# ----------------------------------------------------------------------------
# Kernel 1: fused QKV projection + rotary epilogue, head-major bf16 outputs.
# x tile is read once and drives three bf16 MXU matmuls with f32 accumulators;
# on the last K step rotary is applied in f32 (scale pre-folded into Wq) and
# the results are stored head-major (H, M, Dh) in bf16.
# ----------------------------------------------------------------------------
def _qkv_rotary_proj_kernel(x_ref, wq_ref, wk_ref, wv_ref, cos_ref, sin_ref,
                            q_ref, k_ref, v_ref, acc_q, acc_k, acc_v,
                            *, dim_head):
    k_step = pl.program_id(2)

    @pl.when(k_step == 0)
    def _():
        acc_q[...] = jnp.zeros_like(acc_q)
        acc_k[...] = jnp.zeros_like(acc_k)
        acc_v[...] = jnp.zeros_like(acc_v)

    x = x_ref[...]                                    # (tm, tk) bf16, read once
    acc_q[...] += jnp.dot(x, wq_ref[...], preferred_element_type=jnp.float32)
    acc_k[...] += jnp.dot(x, wk_ref[...], preferred_element_type=jnp.float32)
    acc_v[...] += jnp.dot(x, wv_ref[...], preferred_element_type=jnp.float32)

    @pl.when(k_step == pl.num_programs(2) - 1)
    def _():
        half = dim_head // 2
        cos = cos_ref[...]                            # (tm, half) f32
        sin = sin_ref[...]
        heads_per_tile = q_ref.shape[0]
        # Rotary in f32 on the f32 accumulator — once per output tile,
        # entirely outside the attention kv loop — then head-major bf16 store.
        for hh in range(heads_per_tile):
            lo = hh * dim_head
            qh = acc_q[:, lo:lo + dim_head]           # columns = [real | imag]
            kh = acc_k[:, lo:lo + dim_head]
            q_r, q_i = qh[:, :half], qh[:, half:]
            k_r, k_i = kh[:, :half], kh[:, half:]
            q_rot = jnp.concatenate([q_r * cos - q_i * sin,
                                     q_r * sin + q_i * cos], axis=-1)
            k_rot = jnp.concatenate([k_r * cos - k_i * sin,
                                     k_r * sin + k_i * cos], axis=-1)
            q_ref[hh] = q_rot.astype(q_ref.dtype)
            k_ref[hh] = k_rot.astype(k_ref.dtype)
            v_ref[hh] = acc_v[:, lo:lo + dim_head].astype(v_ref.dtype)


def pallas_qkv_rotary_proj(x2d, wq_t, wk_t, wv_t, cos_m, sin_m,
                           *, num_heads, dim_head):
    """x2d: (M, E) bf16; w*_t: (E, E) bf16 (q/k column-permuted, q pre-scaled);
    cos_m/sin_m: (M, Dh//2) f32  ->  q, k, v each (H, M, Dh) bf16 (rotary done)."""
    M, K = x2d.shape
    E = wq_t.shape[1]
    half = dim_head // 2
    tm = _pick_tile(M, (512, 256, 128))
    tn = _pick_tile(E, (512, 256, 128), multiple_of=dim_head)
    tk = _pick_tile(K, (512, 256, 128))
    hpt = tn // dim_head
    grid = (M // tm, E // tn, K // tk)

    out_sds = jax.ShapeDtypeStruct((num_heads, M, dim_head), jnp.bfloat16)
    out_spec = pl.BlockSpec((hpt, tm, dim_head), lambda i, j, k: (j, i, 0))
    kernel = functools.partial(_qkv_rotary_proj_kernel, dim_head=dim_head)

    return pl.pallas_call(
        kernel,
        out_shape=(out_sds, out_sds, out_sds),
        grid_spec=pltpu.PrefetchScalarGridSpec(
            num_scalar_prefetch=0,
            grid=grid,
            in_specs=[pl.BlockSpec((tm, tk), lambda i, j, k: (i, k)),
                      pl.BlockSpec((tk, tn), lambda i, j, k: (k, j)),
                      pl.BlockSpec((tk, tn), lambda i, j, k: (k, j)),
                      pl.BlockSpec((tk, tn), lambda i, j, k: (k, j)),
                      pl.BlockSpec((tm, half), lambda i, j, k: (i, 0)),
                      pl.BlockSpec((tm, half), lambda i, j, k: (i, 0))],
            out_specs=(out_spec, out_spec, out_spec),
            scratch_shapes=[pltpu.VMEM((tm, tn), jnp.float32),
                            pltpu.VMEM((tm, tn), jnp.float32),
                            pltpu.VMEM((tm, tn), jnp.float32)]),
        compiler_params=pltpu.CompilerParams(
            dimension_semantics=("parallel", "parallel", "arbitrary")),
    )(x2d, wq_t, wk_t, wv_t, cos_m, sin_m)


# ----------------------------------------------------------------------------
# Kernel 2: flash attention with a head grid axis.
# Grid (B, H, q_tiles, kv_tiles); each invocation sees clean (tq, Dh)/(tk, Dh)
# bf16 tiles (rotary and scaling already applied upstream) and runs an online
# softmax with (tq,1)/(tq,1)/(tq,Dh) f32 scratch. SxS scores never materialize.
# ----------------------------------------------------------------------------
def _flash_attn_kernel(q_ref, k_ref, v_ref, mask_ref, o_ref, m_sc, l_sc, acc_sc):
    kv_i = pl.program_id(3)

    @pl.when(kv_i == 0)
    def _():
        m_sc[...] = jnp.full_like(m_sc, -1e30)
        l_sc[...] = jnp.zeros_like(l_sc)
        acc_sc[...] = jnp.zeros_like(acc_sc)

    q = q_ref[...]                                    # (tq, Dh) bf16, pre-scaled+rotated
    k = k_ref[...]                                    # (tk, Dh) bf16
    # scores: contract Dh of both operands — K consumed in natural layout.
    s = lax.dot_general(q, k, (((1,), (1,)), ((), ())),
                        preferred_element_type=jnp.float32)
    s = s + mask_ref[...].astype(jnp.float32)         # additive mask (tq, tk)

    m_prev = m_sc[...]
    m_new = jnp.maximum(m_prev, jnp.max(s, axis=-1, keepdims=True))
    alpha = jnp.exp(m_prev - m_new)
    p = jnp.exp(s - m_new)

    l_sc[...] = alpha * l_sc[...] + jnp.sum(p, axis=-1, keepdims=True)
    acc_sc[...] = alpha * acc_sc[...] + lax.dot_general(
        p.astype(jnp.bfloat16), v_ref[...], (((1,), (0,)), ((), ())),
        preferred_element_type=jnp.float32)
    m_sc[...] = m_new

    @pl.when(kv_i == pl.num_programs(3) - 1)
    def _():
        inv_l = pl.reciprocal(l_sc[...], approx=True)     # EUP slot
        o_ref[...] = (acc_sc[...] * inv_l).astype(o_ref.dtype)


def pallas_flash_attention(q4, k4, v4, attn_mask):
    """q4/k4/v4: (H, B, S, Dh) bf16 (rotary + scale applied to q/k);
    attn_mask: (B, 1, S, S) additive bf16  ->  (H, B, S, Dh) bf16."""
    H, B, S, Dh = q4.shape
    tq = _pick_tile(S, (256, 128))
    tk = _pick_tile(S, (256, 128))
    grid = (B, H, S // tq, S // tk)

    q_spec = pl.BlockSpec((None, None, tq, Dh), lambda b, h, qi, ki: (h, b, qi, 0))
    k_spec = pl.BlockSpec((None, None, tk, Dh), lambda b, h, qi, ki: (h, b, ki, 0))
    # TODO(synk): for pure padding/causal masks, generate the bias in-kernel
    # from scalar-prefetched lengths (broadcasted_iota) instead of streaming a
    # (B,1,S,S) array (it is re-read once per head here); kept general to match
    # the module's arbitrary additive attn_mask argument.
    mask_spec = pl.BlockSpec((None, None, tq, tk), lambda b, h, qi, ki: (b, 0, qi, ki))
    out_spec = pl.BlockSpec((None, None, tq, Dh), lambda b, h, qi, ki: (h, b, qi, 0))

    return pl.pallas_call(
        _flash_attn_kernel,
        out_shape=jax.ShapeDtypeStruct((H, B, S, Dh), jnp.bfloat16),
        grid_spec=pltpu.PrefetchScalarGridSpec(
            num_scalar_prefetch=0,
            grid=grid,
            in_specs=[q_spec, k_spec, k_spec, mask_spec],
            out_specs=out_spec,
            scratch_shapes=[pltpu.VMEM((tq, 1), jnp.float32),     # running max
                            pltpu.VMEM((tq, 1), jnp.float32),     # running sum
                            pltpu.VMEM((tq, Dh), jnp.float32)]),  # accumulator
        compiler_params=pltpu.CompilerParams(
            dimension_semantics=("parallel", "parallel", "parallel", "arbitrary")),
    )(q4, k4, v4, attn_mask)


# ----------------------------------------------------------------------------
# Kernel 3: output projection with bias, contracting the head axis on the grid
# so the head-major attention output is consumed without any HBM relayout.
# ----------------------------------------------------------------------------
def _head_out_proj_kernel(a_ref, w_ref, b_ref, o_ref, acc_ref):
    h = pl.program_id(2)

    @pl.when(h == 0)
    def _():
        acc_ref[...] = jnp.zeros_like(acc_ref)

    acc_ref[...] += jnp.dot(a_ref[...], w_ref[...],
                            preferred_element_type=jnp.float32)

    @pl.when(h == pl.num_programs(2) - 1)
    def _():
        o_ref[...] = (acc_ref[...] + b_ref[...].astype(jnp.float32)).astype(o_ref.dtype)


def pallas_head_out_proj(att_hmd, w_hd, b_row, *, out_dtype):
    """att_hmd: (H, M, Dh) bf16; w_hd: (H, Dh, E) bf16; b_row: (1, E) f32
    -> (M, E) in out_dtype."""
    H, M, Dh = att_hmd.shape
    E = w_hd.shape[2]
    tm = _pick_tile(M, (512, 256, 128))
    tn = _pick_tile(E, (512, 256, 128))
    grid = (M // tm, E // tn, H)

    return pl.pallas_call(
        _head_out_proj_kernel,
        out_shape=jax.ShapeDtypeStruct((M, E), out_dtype),
        grid_spec=pltpu.PrefetchScalarGridSpec(
            num_scalar_prefetch=0,
            grid=grid,
            in_specs=[pl.BlockSpec((None, tm, Dh), lambda i, j, h: (h, i, 0)),
                      pl.BlockSpec((None, Dh, tn), lambda i, j, h: (h, 0, j)),
                      pl.BlockSpec((1, tn), lambda i, j, h: (0, j))],
            out_specs=pl.BlockSpec((tm, tn), lambda i, j, h: (i, j)),
            scratch_shapes=[pltpu.VMEM((tm, tn), jnp.float32)]),
        compiler_params=pltpu.CompilerParams(
            dimension_semantics=("parallel", "parallel", "arbitrary")),
    )(att_hmd, w_hd, b_row)


# ----------------------------------------------------------------------------
# One-time parameter preparation + full module forward
# ----------------------------------------------------------------------------
def prepare_params(params, num_heads):
    """One-time weight prep: transpose, rotary de-interleave permutation on the
    Wq/Wk columns, 1/sqrt(Dh) folded into Wq, head-major reshape of Wo, bf16
    casts.  Called once, not per forward."""
    E = params["wq"].shape[0]
    Dh = E // num_heads
    assert Dh % 2 == 0
    perm = _deinterleave_perm(num_heads, Dh)
    scale = 1.0 / math.sqrt(Dh)
    return {
        "num_heads": num_heads,
        "dim_head": Dh,
        "wq_t": (params["wq"].T[:, perm] * scale).astype(jnp.bfloat16),
        "wk_t": params["wk"].T[:, perm].astype(jnp.bfloat16),
        "wv_t": params["wv"].T.astype(jnp.bfloat16),
        "wo_hd": params["wo"].T.reshape(num_heads, Dh, E).astype(jnp.bfloat16),
        "bo_row": params["bo"].reshape(1, E).astype(jnp.float32),
    }


def rotary_self_attention_forward(prep, x, attn_mask, freqs_cos, freqs_sin):
    B, S, E = x.shape
    H, Dh = prep["num_heads"], prep["dim_head"]
    M = B * S

    x2d = x.reshape(M, E).astype(jnp.bfloat16)
    cos_m = jnp.tile(freqs_cos.astype(jnp.float32), (B, 1))   # (M, Dh//2)
    sin_m = jnp.tile(freqs_sin.astype(jnp.float32), (B, 1))

    q, k, v = pallas_qkv_rotary_proj(x2d, prep["wq_t"], prep["wk_t"], prep["wv_t"],
                                     cos_m, sin_m, num_heads=H, dim_head=Dh)

    # (H, M, Dh) -> (H, B, S, Dh): free metadata reshape, no HBM relayout.
    q4 = q.reshape(H, B, S, Dh)
    k4 = k.reshape(H, B, S, Dh)
    v4 = v.reshape(H, B, S, Dh)

    att = pallas_flash_attention(q4, k4, v4, attn_mask.astype(jnp.bfloat16))

    out2d = pallas_head_out_proj(att.reshape(H, M, Dh), prep["wo_hd"],
                                 prep["bo_row"], out_dtype=x.dtype)
    # TODO(synk): training-mode dropout on attention weights, is_causal=True and
    # return_attn_weights=True paths not implemented (eval semantics, additive
    # mask, attn_weights is None).
    return out2d.reshape(B, S, E), None


# ----------------------------------------------------------------------------
# Pure-JAX reference (mirrors the PyTorch forward exactly) for verification
# ----------------------------------------------------------------------------
def reference_forward(params, x, attn_mask, freqs_cos, freqs_sin, num_heads):
    B, S, E = x.shape
    Dh = E // num_heads
    xq = x @ params["wq"].T
    xk = x @ params["wk"].T
    xv = x @ params["wv"].T
    xq = xq.reshape(B, S, num_heads, Dh)
    xk = xk.reshape(B, S, num_heads, Dh)
    xv = xv.reshape(B, S, num_heads, Dh)

    cos_b = freqs_cos[None, :, None, :]
    sin_b = freqs_sin[None, :, None, :]

    def rot(t):
        tr, ti = t[..., 0::2], t[..., 1::2]
        or_ = tr * cos_b - ti * sin_b
        oi_ = tr * sin_b + ti * cos_b
        return jnp.stack([or_, oi_], axis=-1).reshape(t.shape)

    xq, xk = rot(xq), rot(xk)
    xq = xq.transpose(0, 2, 1, 3)
    xk = xk.transpose(0, 2, 1, 3)
    xv = xv.transpose(0, 2, 1, 3)

    scale = 1.0 / math.sqrt(Dh)
    s = jnp.einsum("bhqd,bhkd->bhqk", xq, xk) * scale + attn_mask
    w = jax.nn.softmax(s, axis=-1)
    att = jnp.einsum("bhqk,bhkd->bhqd", w, xv)
    out = att.transpose(0, 2, 1, 3).reshape(B, S, E)
    return out @ params["wo"].T + params["bo"]


# ----------------------------------------------------------------------------
if __name__ == "__main__":
    B, S, E, H = 2, 8, 32, 4
    Dh = E // H

    key = jax.random.PRNGKey(0)
    k_x, k_q, k_k, k_v, k_o, k_b = jax.random.split(key, 6)

    x = jax.random.normal(k_x, (B, S, E), dtype=jnp.float32)

    # deterministic parameter init (nn.Linear weight shape: (out, in))
    params = {
        "wq": 0.05 * jax.random.normal(k_q, (E, E), dtype=jnp.float32),
        "wk": 0.05 * jax.random.normal(k_k, (E, E), dtype=jnp.float32),
        "wv": 0.05 * jax.random.normal(k_v, (E, E), dtype=jnp.float32),
        "wo": 0.05 * jax.random.normal(k_o, (E, E), dtype=jnp.float32),
        "bo": 0.05 * jax.random.normal(k_b, (E,), dtype=jnp.float32),
    }

    # rotary frequencies: (S, Dh//2)
    inv_freq = 1.0 / (10000.0 ** (jnp.arange(0, Dh, 2, dtype=jnp.float32) / Dh))
    t = jnp.arange(S, dtype=jnp.float32)
    angles = jnp.outer(t, inv_freq)
    freqs_cos = jnp.cos(angles)
    freqs_sin = jnp.sin(angles)

    # additive attention mask (B, 1, S, S): mask out last key position for batch 1
    attn_mask = jnp.zeros((B, 1, S, S), dtype=jnp.float32)
    attn_mask = attn_mask.at[1, 0, :, S - 1].set(-1e9)

    prep = prepare_params(params, H)
    out, attn_w = rotary_self_attention_forward(prep, x, attn_mask,
                                                freqs_cos, freqs_sin)
    out = jax.block_until_ready(out)

    ref = reference_forward(params, x, attn_mask, freqs_cos, freqs_sin, H)
    assert out.shape == (B, S, E)
    assert attn_w is None
    assert bool(jnp.all(jnp.isfinite(out)))
    err = float(jnp.max(jnp.abs(out - ref)))
    assert jnp.allclose(out, ref, rtol=2e-2, atol=2e-2), f"max abs err {err}"

    print("KERNEL_OK")
</pallas_src>

<mosaic_0001>
module attributes {stable_mosaic.version = 11 : i64} {
  func.func @_qkv_rotary_proj_kernel(%arg0: i32, %arg1: i32, %arg2: i32, %arg3: memref<16x32xbf16, #tpu.memory_space<vmem>>, %arg4: memref<32x32xbf16, #tpu.memory_space<vmem>>, %arg5: memref<32x32xbf16, #tpu.memory_space<vmem>>, %arg6: memref<32x32xbf16, #tpu.memory_space<vmem>>, %arg7: memref<16x4xf32, #tpu.memory_space<vmem>>, %arg8: memref<16x4xf32, #tpu.memory_space<vmem>>, %arg9: memref<4x16x8xbf16, #tpu.memory_space<vmem>>, %arg10: memref<4x16x8xbf16, #tpu.memory_space<vmem>>, %arg11: memref<4x16x8xbf16, #tpu.memory_space<vmem>>, %arg12: memref<16x32xf32, #tpu.memory_space<vmem>>, %arg13: memref<16x32xf32, #tpu.memory_space<vmem>>, %arg14: memref<16x32xf32, #tpu.memory_space<vmem>>) attributes {dimension_semantics = [#tpu.dimension_semantics<parallel>, #tpu.dimension_semantics<parallel>, #tpu.dimension_semantics<arbitrary>], iteration_bounds = array<i64: 1, 1, 1>, scalar_prefetch = 0 : i64, scratch_operands = 3 : i64, tpu.core_type = #tpu.core_type<tc>, window_params = [{transform_indices = @transform_0, window_bounds = array<i64: 16, 32>}, {transform_indices = @transform_1, window_bounds = array<i64: 32, 32>}, {transform_indices = @transform_2, window_bounds = array<i64: 32, 32>}, {transform_indices = @transform_3, window_bounds = array<i64: 32, 32>}, {transform_indices = @transform_4, window_bounds = array<i64: 16, 4>}, {transform_indices = @transform_5, window_bounds = array<i64: 16, 4>}, {transform_indices = @transform_6, window_bounds = array<i64: 4, 16, 8>}, {transform_indices = @transform_7, window_bounds = array<i64: 4, 16, 8>}, {transform_indices = @transform_8, window_bounds = array<i64: 4, 16, 8>}]} {
    %c0_i32 = arith.constant 0 : i32
    %0 = arith.cmpi eq, %arg2, %c0_i32 : i32
    %1 = arith.extui %0 : i1 to i32
    %c0_i32_0 = arith.constant 0 : i32
    %2 = arith.cmpi ne, %1, %c0_i32_0 : i32
    scf.if %2 {
      %cst_24 = arith.constant 0.000000e+00 : f32
      %22 = vector.broadcast %cst_24 : f32 to vector<16x32xf32>
      %c0_25 = arith.constant 0 : index
      %c0_26 = arith.constant 0 : index
      %23 = vector.load %arg12[%c0_25, %c0_26] : memref<16x32xf32, #tpu.memory_space<vmem>>, vector<16x32xf32>
      tpu.vector_store %arg12[%c0_25, %c0_26], %22 {strides = array<i32>} : memref<16x32xf32, #tpu.memory_space<vmem>>, vector<16x32xf32>,
      %cst_27 = arith.constant 0.000000e+00 : f32
      %24 = vector.broadcast %cst_27 : f32 to vector<16x32xf32>
      %c0_28 = arith.constant 0 : index
      %c0_29 = arith.constant 0 : index
      %25 = vector.load %arg13[%c0_28, %c0_29] : memref<16x32xf32, #tpu.memory_space<vmem>>, vector<16x32xf32>
      tpu.vector_store %arg13[%c0_28, %c0_29], %24 {strides = array<i32>} : memref<16x32xf32, #tpu.memory_space<vmem>>, vector<16x32xf32>,
      %cst_30 = arith.constant 0.000000e+00 : f32
      %26 = vector.broadcast %cst_30 : f32 to vector<16x32xf32>
      %c0_31 = arith.constant 0 : index
      %c0_32 = arith.constant 0 : index
      %27 = vector.load %arg14[%c0_31, %c0_32] : memref<16x32xf32, #tpu.memory_space<vmem>>, vector<16x32xf32>
      tpu.vector_store %arg14[%c0_31, %c0_32], %26 {strides = array<i32>} : memref<16x32xf32, #tpu.memory_space<vmem>>, vector<16x32xf32>,
    } else {
    }
    %c0 = arith.constant 0 : index
    %c0_1 = arith.constant 0 : index
    %3 = vector.load %arg3[%c0, %c0_1] : memref<16x32xbf16, #tpu.memory_space<vmem>>, vector<16x32xbf16>
    %c0_2 = arith.constant 0 : index
    %c0_3 = arith.constant 0 : index
    %4 = vector.load %arg12[%c0_2, %c0_3] : memref<16x32xf32, #tpu.memory_space<vmem>>, vector<16x32xf32>
    %c0_4 = arith.constant 0 : index
    %c0_5 = arith.constant 0 : index
    %5 = vector.load %arg4[%c0_4, %c0_5] : memref<32x32xbf16, #tpu.memory_space<vmem>>, vector<32x32xbf16>
    %cst = arith.constant dense<0.000000e+00> : vector<16x32xf32>
    %6 = tpu.matmul %3, %5, %cst {dimension_numbers = #tpu.dot_dimension_numbers<[1], [0], [0], [1], [0, 0, 1, 1], [], []>} : vector<16x32xbf16>, vector<32x32xbf16>, vector<16x32xf32> -> vector<16x32xf32>
    %7 = arith.addf %4, %6 : vector<16x32xf32>
    %c0_6 = arith.constant 0 : index
    %c0_7 = arith.constant 0 : index
    %8 = vector.load %arg12[%c0_6, %c0_7] : memref<16x32xf32, #tpu.memory_space<vmem>>, vector<16x32xf32>
    tpu.vector_store %arg12[%c0_6, %c0_7], %7 {strides = array<i32>} : memref<16x32xf32, #tpu.memory_space<vmem>>, vector<16x32xf32>,
    %c0_8 = arith.constant 0 : index
    %c0_9 = arith.constant 0 : index
    %9 = vector.load %arg13[%c0_8, %c0_9] : memref<16x32xf32, #tpu.memory_space<vmem>>, vector<16x32xf32>
    %c0_10 = arith.constant 0 : index
    %c0_11 = arith.constant 0 : index
    %10 = vector.load %arg5[%c0_10, %c0_11] : memref<32x32xbf16, #tpu.memory_space<vmem>>, vector<32x32xbf16>
    %cst_12 = arith.constant dense<0.000000e+00> : vector<16x32xf32>
    %11 = tpu.matmul %3, %10, %cst_12 {dimension_numbers = #tpu.dot_dimension_numbers<[1], [0], [0], [1], [0, 0, 1, 1], [], []>} : vector<16x32xbf16>, vector<32x32xbf16>, vector<16x32xf32> -> vector<16x32xf32>
    %12 = arith.addf %9, %11 : vector<16x32xf32>
    %c0_13 = arith.constant 0 : index
    %c0_14 = arith.constant 0 : index
    %13 = vector.load %arg13[%c0_13, %c0_14] : memref<16x32xf32, #tpu.memory_space<vmem>>, vector<16x32xf32>
    tpu.vector_store %arg13[%c0_13, %c0_14], %12 {strides = array<i32>} : memref<16x32xf32, #tpu.memory_space<vmem>>, vector<16x32xf32>,
    %c0_15 = arith.constant 0 : index
    %c0_16 = arith.constant 0 : index
    %14 = vector.load %arg14[%c0_15, %c0_16] : memref<16x32xf32, #tpu.memory_space<vmem>>, vector<16x32xf32>
    %c0_17 = arith.constant 0 : index
    %c0_18 = arith.constant 0 : index
    %15 = vector.load %arg6[%c0_17, %c0_18] : memref<32x32xbf16, #tpu.memory_space<vmem>>, vector<32x32xbf16>
    %cst_19 = arith.constant dense<0.000000e+00> : vector<16x32xf32>
    %16 = tpu.matmul %3, %15, %cst_19 {dimension_numbers = #tpu.dot_dimension_numbers<[1], [0], [0], [1], [0, 0, 1, 1], [], []>} : vector<16x32xbf16>, vector<32x32xbf16>, vector<16x32xf32> -> vector<16x32xf32>
    %17 = arith.addf %14, %16 : vector<16x32xf32>
    %c0_20 = arith.constant 0 : index
    %c0_21 = arith.constant 0 : index
    %18 = vector.load %arg14[%c0_20, %c0_21] : memref<16x32xf32, #tpu.memory_space<vmem>>, vector<16x32xf32>
    tpu.vector_store %arg14[%c0_20, %c0_21], %17 {strides = array<i32>} : memref<16x32xf32, #tpu.memory_space<vmem>>, vector<16x32xf32>,
    %c0_i32_22 = arith.constant 0 : i32
    %19 = arith.cmpi eq, %arg2, %c0_i32_22 : i32
    %20 = arith.extui %19 : i1 to i32
    %c0_i32_23 = arith.constant 0 : i32
    %21 = arith.cmpi ne, %20, %c0_i32_23 : i32
    scf.if %21 {
      %c0_24 = arith.constant 0 : index
      %c0_25 = arith.constant 0 : index
      %22 = vector.load %arg7[%c0_24, %c0_25] : memref<16x4xf32, #tpu.memory_space<vmem>>, vector<16x4xf32>
      %c0_26 = arith.constant 0 : index
      %c0_27 = arith.constant 0 : index
      %23 = vector.load %arg8[%c0_26, %c0_27] : memref<16x4xf32, #tpu.memory_space<vmem>>, vector<16x4xf32>
      %c0_28 = arith.constant 0 : index
      %c0_29 = arith.constant 0 : index
      %24 = vector.load %arg12[%c0_28, %c0_29] : memref<16x32xf32, #tpu.memory_space<vmem>>, vector<16x8xf32>
      %c0_30 = arith.constant 0 : index
      %c0_31 = arith.constant 0 : index
      %25 = vector.load %arg13[%c0_30, %c0_31] : memref<16x32xf32, #tpu.memory_space<vmem>>, vector<16x8xf32>
      %26 = vector.extract_strided_slice %24 {offsets = [0, 0], sizes = [16, 4], strides = [1, 1]} : vector<16x8xf32> to vector<16x4xf32>
      %27 = vector.extract_strided_slice %24 {offsets = [0, 4], sizes = [16, 4], strides = [1, 1]} : vector<16x8xf32> to vector<16x4xf32>
      %28 = vector.extract_strided_slice %25 {offsets = [0, 0], sizes = [16, 4], strides = [1, 1]} : vector<16x8xf32> to vector<16x4xf32>
      %29 = vector.extract_strided_slice %25 {offsets = [0, 4], sizes = [16, 4], strides = [1, 1]} : vector<16x8xf32> to vector<16x4xf32>
      %30 = arith.mulf %26, %22 : vector<16x4xf32>
      %31 = arith.mulf %27, %23 : vector<16x4xf32>
      %32 = arith.subf %30, %31 : vector<16x4xf32>
      %33 = arith.mulf %26, %23 : vector<16x4xf32>
      %34 = arith.mulf %27, %22 : vector<16x4xf32>
      %35 = arith.addf %33, %34 : vector<16x4xf32>
      %36 = tpu.concatenate %32, %35 in 1 : vector<16x4xf32>, vector<16x4xf32> -> vector<16x8xf32>
      %37 = arith.mulf %28, %22 : vector<16x4xf32>
      %38 = arith.mulf %29, %23 : vector<16x4xf32>
      %39 = arith.subf %37, %38 : vector<16x4xf32>
      %40 = arith.mulf %28, %23 : vector<16x4xf32>
      %41 = arith.mulf %29, %22 : vector<16x4xf32>
      %42 = arith.addf %40, %41 : vector<16x4xf32>
      %43 = tpu.concatenate %39, %42 in 1 : vector<16x4xf32>, vector<16x4xf32> -> vector<16x8xf32>
      %44 = arith.truncf %36 : vector<16x8xf32> to vector<16x8xbf16>
      %c0_32 = arith.constant 0 : index
      %c0_33 = arith.constant 0 : index
      %c0_34 = arith.constant 0 : index
      %45 = vector.load %arg9[%c0_32, %c0_33, %c0_34] : memref<4x16x8xbf16, #tpu.memory_space<vmem>>, vector<1x16x8xbf16>
      %46 = vector.shape_cast %45 : vector<1x16x8xbf16> to vector<16x8xbf16>
      %47 = vector.shape_cast %44 : vector<16x8xbf16> to vector<1x16x8xbf16>
      tpu.vector_store %arg9[%c0_32, %c0_33, %c0_34], %47 {strides = array<i32>} : memref<4x16x8xbf16, #tpu.memory_space<vmem>>, vector<1x16x8xbf16>,
      %48 = arith.truncf %43 : vector<16x8xf32> to vector<16x8xbf16>
      %c0_35 = arith.constant 0 : index
      %c0_36 = arith.constant 0 : index
      %c0_37 = arith.constant 0 : index
      %49 = vector.load %arg10[%c0_35, %c0_36, %c0_37] : memref<4x16x8xbf16, #tpu.memory_space<vmem>>, vector<1x16x8xbf16>
      %50 = vector.shape_cast %49 : vector<1x16x8xbf16> to vector<16x8xbf16>
      %51 = vector.shape_cast %48 : vector<16x8xbf16> to vector<1x16x8xbf16>
      tpu.vector_store %arg10[%c0_35, %c0_36, %c0_37], %51 {strides = array<i32>} : memref<4x16x8xbf16, #tpu.memory_space<vmem>>, vector<1x16x8xbf16>,
      %c0_38 = arith.constant 0 : index
      %c0_39 = arith.constant 0 : index
      %52 = vector.load %arg14[%c0_38, %c0_39] : memref<16x32xf32, #tpu.memory_space<vmem>>, vector<16x8xf32>
      %53 = arith.truncf %52 : vector<16x8xf32> to vector<16x8xbf16>
      %c0_40 = arith.constant 0 : index
      %c0_41 = arith.constant 0 : index
      %c0_42 = arith.constant 0 : index
      %54 = vector.load %arg11[%c0_40, %c0_41, %c0_42] : memref<4x16x8xbf16, #tpu.memory_space<vmem>>, vector<1x16x8xbf16>
      %55 = vector.shape_cast %54 : vector<1x16x8xbf16> to vector<16x8xbf16>
      %56 = vector.shape_cast %53 : vector<16x8xbf16> to vector<1x16x8xbf16>
      tpu.vector_store %arg11[%c0_40, %c0_41, %c0_42], %56 {strides = array<i32>} : memref<4x16x8xbf16, #tpu.memory_space<vmem>>, vector<1x16x8xbf16>,
      %c0_43 = arith.constant 0 : index
      %c8 = arith.constant 8 : index
      %57 = vector.load %arg12[%c0_43, %c8] : memref<16x32xf32, #tpu.memory_space<vmem>>, vector<16x8xf32>
      %c0_44 = arith.constant 0 : index
      %c8_45 = arith.constant 8 : index
      %58 = vector.load %arg13[%c0_44, %c8_45] : memref<16x32xf32, #tpu.memory_space<vmem>>, vector<16x8xf32>
      %59 = vector.extract_strided_slice %57 {offsets = [0, 0], sizes = [16, 4], strides = [1, 1]} : vector<16x8xf32> to vector<16x4xf32>
      %60 = vector.extract_strided_slice %57 {offsets = [0, 4], sizes = [16, 4], strides = [1, 1]} : vector<16x8xf32> to vector<16x4xf32>
      %61 = vector.extract_strided_slice %58 {offsets = [0, 0], sizes = [16, 4], strides = [1, 1]} : vector<16x8xf32> to vector<16x4xf32>
      %62 = vector.extract_strided_slice %58 {offsets = [0, 4], sizes = [16, 4], strides = [1, 1]} : vector<16x8xf32> to vector<16x4xf32>
      %63 = arith.mulf %59, %22 : vector<16x4xf32>
      %64 = arith.mulf %60, %23 : vector<16x4xf32>
      %65 = arith.subf %63, %64 : vector<16x4xf32>
      %66 = arith.mulf %59, %23 : vector<16x4xf32>
      %67 = arith.mulf %60, %22 : vector<16x4xf32>
      %68 = arith.addf %66, %67 : vector<16x4xf32>
      %69 = tpu.concatenate %65, %68 in 1 : vector<16x4xf32>, vector<16x4xf32> -> vector<16x8xf32>
      %70 = arith.mulf %61, %22 : vector<16x4xf32>
      %71 = arith.mulf %62, %23 : vector<16x4xf32>
      %72 = arith.subf %70, %71 : vector<16x4xf32>
      %73 = arith.mulf %61, %23 : vector<16x4xf32>
      %74 = arith.mulf %62, %22 : vector<16x4xf32>
      %75 = arith.addf %73, %74 : vector<16x4xf32>
      %76 = tpu.concatenate %72, %75 in 1 : vector<16x4xf32>, vector<16x4xf32> -> vector<16x8xf32>
      %77 = arith.truncf %69 : vector<16x8xf32> to vector<16x8xbf16>
      %c1 = arith.constant 1 : index
      %c0_46 = arith.constant 0 : index
      %c0_47 = arith.constant 0 : index
      %78 = vector.load %arg9[%c1, %c0_46, %c0_47] : memref<4x16x8xbf16, #tpu.memory_space<vmem>>, vector<1x16x8xbf16>
      %79 = vector.shape_cast %78 : vector<1x16x8xbf16> to vector<16x8xbf16>
      %80 = vector.shape_cast %77 : vector<16x8xbf16> to vector<1x16x8xbf16>
      tpu.vector_store %arg9[%c1, %c0_46, %c0_47], %80 {strides = array<i32>} : memref<4x16x8xbf16, #tpu.memory_space<vmem>>, vector<1x16x8xbf16>,
      %81 = arith.truncf %76 : vector<16x8xf32> to vector<16x8xbf16>
      %c1_48 = arith.constant 1 : index
      %c0_49 = arith.constant 0 : index
      %c0_50 = arith.constant 0 : index
      %82 = vector.load %arg10[%c1_48, %c0_49, %c0_50] : memref<4x16x8xbf16, #tpu.memory_space<vmem>>, vector<1x16x8xbf16>
      %83 = vector.shape_cast %82 : vector<1x16x8xbf16> to vector<16x8xbf16>
      %84 = vector.shape_cast %81 : vector<16x8xbf16> to vector<1x16x8xbf16>
      tpu.vector_store %arg10[%c1_48, %c0_49, %c0_50], %84 {strides = array<i32>} : memref<4x16x8xbf16, #tpu.memory_space<vmem>>, vector<1x16x8xbf16>,
      %c0_51 = arith.constant 0 : index
      %c8_52 = arith.constant 8 : index
      %85 = vector.load %arg14[%c0_51, %c8_52] : memref<16x32xf32, #tpu.memory_space<vmem>>, vector<16x8xf32>
      %86 = arith.truncf %85 : vector<16x8xf32> to vector<16x8xbf16>
      %c1_53 = arith.constant 1 : index
      %c0_54 = arith.constant 0 : index
      %c0_55 = arith.constant 0 : index
      %87 = vector.load %arg11[%c1_53, %c0_54, %c0_55] : memref<4x16x8xbf16, #tpu.memory_space<vmem>>, vector<1x16x8xbf16>
      %88 = vector.shape_cast %87 : vector<1x16x8xbf16> to vector<16x8xbf16>
      %89 = vector.shape_cast %86 : vector<16x8xbf16> to vector<1x16x8xbf16>
      tpu.vector_store %arg11[%c1_53, %c0_54, %c0_55], %89 {strides = array<i32>} : memref<4x16x8xbf16, #tpu.memory_space<vmem>>, vector<1x16x8xbf16>,
      %c0_56 = arith.constant 0 : index
      %c16 = arith.constant 16 : index
      %90 = vector.load %arg12[%c0_56, %c16] : memref<16x32xf32, #tpu.memory_space<vmem>>, vector<16x8xf32>
      %c0_57 = arith.constant 0 : index
      %c16_58 = arith.constant 16 : index
      %91 = vector.load %arg13[%c0_57, %c16_58] : memref<16x32xf32, #tpu.memory_space<vmem>>, vector<16x8xf32>
      %92 = vector.extract_strided_slice %90 {offsets = [0, 0], sizes = [16, 4], strides = [1, 1]} : vector<16x8xf32> to vector<16x4xf32>
      %93 = vector.extract_strided_slice %90 {offsets = [0, 4], sizes = [16, 4], strides = [1, 1]} : vector<16x8xf32> to vector<16x4xf32>
      %94 = vector.extract_strided_slice %91 {offsets = [0, 0], sizes = [16, 4], strides = [1, 1]} : vector<16x8xf32> to vector<16x4xf32>
      %95 = vector.extract_strided_slice %91 {offsets = [0, 4], sizes = [16, 4], strides = [1, 1]} : vector<16x8xf32> to vector<16x4xf32>
      %96 = arith.mulf %92, %22 : vector<16x4xf32>
      %97 = arith.mulf %93, %23 : vector<16x4xf32>
      %98 = arith.subf %96, %97 : vector<16x4xf32>
      %99 = arith.mulf %92, %23 : vector<16x4xf32>
      %100 = arith.mulf %93, %22 : vector<16x4xf32>
      %101 = arith.addf %99, %100 : vector<16x4xf32>
      %102 = tpu.concatenate %98, %101 in 1 : vector<16x4xf32>, vector<16x4xf32> -> vector<16x8xf32>
      %103 = arith.mulf %94, %22 : vector<16x4xf32>
      %104 = arith.mulf %95, %23 : vector<16x4xf32>
      %105 = arith.subf %103, %104 : vector<16x4xf32>
      %106 = arith.mulf %94, %23 : vector<16x4xf32>
      %107 = arith.mulf %95, %22 : vector<16x4xf32>
      %108 = arith.addf %106, %107 : vector<16x4xf32>
      %109 = tpu.concatenate %105, %108 in 1 : vector<16x4xf32>, vector<16x4xf32> -> vector<16x8xf32>
      %110 = arith.truncf %102 : vector<16x8xf32> to vector<16x8xbf16>
      %c2 = arith.constant 2 : index
      %c0_59 = arith.constant 0 : index
      %c0_60 = arith.constant 0 : index
      %111 = vector.load %arg9[%c2, %c0_59, %c0_60] : memref<4x16x8xbf16, #tpu.memory_space<vmem>>, vector<1x16x8xbf16>
      %112 = vector.shape_cast %111 : vector<1x16x8xbf16> to vector<16x8xbf16>
      %113 = vector.shape_cast %110 : vector<16x8xbf16> to vector<1x16x8xbf16>
      tpu.vector_store %arg9[%c2, %c0_59, %c0_60], %113 {strides = array<i32>} : memref<4x16x8xbf16, #tpu.memory_space<vmem>>, vector<1x16x8xbf16>,
      %114 = arith.truncf %109 : vector<16x8xf32> to vector<16x8xbf16>
      %c2_61 = arith.constant 2 : index
      %c0_62 = arith.constant 0 : index
      %c0_63 = arith.constant 0 : index
      %115 = vector.load %arg10[%c2_61, %c0_62, %c0_63] : memref<4x16x8xbf16, #tpu.memory_space<vmem>>, vector<1x16x8xbf16>
      %116 = vector.shape_cast %115 : vector<1x16x8xbf16> to vector<16x8xbf16>
      %117 = vector.shape_cast %114 : vector<16x8xbf16> to vector<1x16x8xbf16>
      tpu.vector_store %arg10[%c2_61, %c0_62, %c0_63], %117 {strides = array<i32>} : memref<4x16x8xbf16, #tpu.memory_space<vmem>>, vector<1x16x8xbf16>,
      %c0_64 = arith.constant 0 : index
      %c16_65 = arith.constant 16 : index
      %118 = vector.load %arg14[%c0_64, %c16_65] : memref<16x32xf32, #tpu.memory_space<vmem>>, vector<16x8xf32>
      %119 = arith.truncf %118 : vector<16x8xf32> to vector<16x8xbf16>
      %c2_66 = arith.constant 2 : index
      %c0_67 = arith.constant 0 : index
      %c0_68 = arith.constant 0 : index
      %120 = vector.load %arg11[%c2_66, %c0_67, %c0_68] : memref<4x16x8xbf16, #tpu.memory_space<vmem>>, vector<1x16x8xbf16>
      %121 = vector.shape_cast %120 : vector<1x16x8xbf16> to vector<16x8xbf16>
      %122 = vector.shape_cast %119 : vector<16x8xbf16> to vector<1x16x8xbf16>
      tpu.vector_store %arg11[%c2_66, %c0_67, %c0_68], %122 {strides = array<i32>} : memref<4x16x8xbf16, #tpu.memory_space<vmem>>, vector<1x16x8xbf16>,
      %c0_69 = arith.constant 0 : index
      %c24 = arith.constant 24 : index
      %123 = vector.load %arg12[%c0_69, %c24] : memref<16x32xf32, #tpu.memory_space<vmem>>, vector<16x8xf32>
      %c0_70 = arith.constant 0 : index
      %c24_71 = arith.constant 24 : index
      %124 = vector.load %arg13[%c0_70, %c24_71] : memref<16x32xf32, #tpu.memory_space<vmem>>, vector<16x8xf32>
      %125 = vector.extract_strided_slice %123 {offsets = [0, 0], sizes = [16, 4], strides = [1, 1]} : vector<16x8xf32> to vector<16x4xf32>
      %126 = vector.extract_strided_slice %123 {offsets = [0, 4], sizes = [16, 4], strides = [1, 1]} : vector<16x8xf32> to vector<16x4xf32>
      %127 = vector.extract_strided_slice %124 {offsets = [0, 0], sizes = [16, 4], strides = [1, 1]} : vector<16x8xf32> to vector<16x4xf32>
      %128 = vector.extract_strided_slice %124 {offsets = [0, 4], sizes = [16, 4], strides = [1, 1]} : vector<16x8xf32> to vector<16x4xf32>
      %129 = arith.mulf %125, %22 : vector<16x4xf32>
      %130 = arith.mulf %126, %23 : vector<16x4xf32>
      %131 = arith.subf %129, %130 : vector<16x4xf32>
      %132 = arith.mulf %125, %23 : vector<16x4xf32>
      %133 = arith.mulf %126, %22 : vector<16x4xf32>
      %134 = arith.addf %132, %133 : vector<16x4xf32>
      %135 = tpu.concatenate %131, %134 in 1 : vector<16x4xf32>, vector<16x4xf32> -> vector<16x8xf32>
      %136 = arith.mulf %127, %22 : vector<16x4xf32>
      %137 = arith.mulf %128, %23 : vector<16x4xf32>
      %138 = arith.subf %136, %137 : vector<16x4xf32>
      %139 = arith.mulf %127, %23 : vector<16x4xf32>
      %140 = arith.mulf %128, %22 : vector<16x4xf32>
      %141 = arith.addf %139, %140 : vector<16x4xf32>
      %142 = tpu.concatenate %138, %141 in 1 : vector<16x4xf32>, vector<16x4xf32> -> vector<16x8xf32>
      %143 = arith.truncf %135 : vector<16x8xf32> to vector<16x8xbf16>
      %c3 = arith.constant 3 : index
      %c0_72 = arith.constant 0 : index
      %c0_73 = arith.constant 0 : index
      %144 = vector.load %arg9[%c3, %c0_72, %c0_73] : memref<4x16x8xbf16, #tpu.memory_space<vmem>>, vector<1x16x8xbf16>
      %145 = vector.shape_cast %144 : vector<1x16x8xbf16> to vector<16x8xbf16>
      %146 = vector.shape_cast %143 : vector<16x8xbf16> to vector<1x16x8xbf16>
      tpu.vector_store %arg9[%c3, %c0_72, %c0_73], %146 {strides = array<i32>} : memref<4x16x8xbf16, #tpu.memory_space<vmem>>, vector<1x16x8xbf16>,
      %147 = arith.truncf %142 : vector<16x8xf32> to vector<16x8xbf16>
      %c3_74 = arith.constant 3 : index
      %c0_75 = arith.constant 0 : index
      %c0_76 = arith.constant 0 : index
      %148 = vector.load %arg10[%c3_74, %c0_75, %c0_76] : memref<4x16x8xbf16, #tpu.memory_space<vmem>>, vector<1x16x8xbf16>
      %149 = vector.shape_cast %148 : vector<1x16x8xbf16> to vector<16x8xbf16>
      %150 = vector.shape_cast %147 : vector<16x8xbf16> to vector<1x16x8xbf16>
      tpu.vector_store %arg10[%c3_74, %c0_75, %c0_76], %150 {strides = array<i32>} : memref<4x16x8xbf16, #tpu.memory_space<vmem>>, vector<1x16x8xbf16>,
      %c0_77 = arith.constant 0 : index
      %c24_78 = arith.constant 24 : index
      %151 = vector.load %arg14[%c0_77, %c24_78] : memref<16x32xf32, #tpu.memory_space<vmem>>, vector<16x8xf32>
      %152 = arith.truncf %151 : vector<16x8xf32> to vector<16x8xbf16>
      %c3_79 = arith.constant 3 : index
      %c0_80 = arith.constant 0 : index
      %c0_81 = arith.constant 0 : index
      %153 = vector.load %arg11[%c3_79, %c0_80, %c0_81] : memref<4x16x8xbf16, #tpu.memory_space<vmem>>, vector<1x16x8xbf16>
      %154 = vector.shape_cast %153 : vector<1x16x8xbf16> to vector<16x8xbf16>
      %155 = vector.shape_cast %152 : vector<16x8xbf16> to vector<1x16x8xbf16>
      tpu.vector_store %arg11[%c3_79, %c0_80, %c0_81], %155 {strides = array<i32>} : memref<4x16x8xbf16, #tpu.memory_space<vmem>>, vector<1x16x8xbf16>,
    } else {
    }
    return
  }
  func.func @transform_0(%arg0: i32, %arg1: i32, %arg2: i32) -> (i32, i32) {
    %c0_i32 = arith.constant 0 : i32
    return %arg0, %arg2 : i32, i32
  }
  func.func @transform_1(%arg0: i32, %arg1: i32, %arg2: i32) -> (i32, i32) {
    %c0_i32 = arith.constant 0 : i32
    return %arg2, %arg1 : i32, i32
  }
  func.func @transform_2(%arg0: i32, %arg1: i32, %arg2: i32) -> (i32, i32) {
    %c0_i32 = arith.constant 0 : i32
    return %arg2, %arg1 : i32, i32
  }
  func.func @transform_3(%arg0: i32, %arg1: i32, %arg2: i32) -> (i32, i32) {
    %c0_i32 = arith.constant 0 : i32
    return %arg2, %arg1 : i32, i32
  }
  func.func @transform_4(%arg0: i32, %arg1: i32, %arg2: i32) -> (i32, i32) {
    %c0_i32 = arith.constant 0 : i32
    %c0_i32_0 = arith.constant 0 : i32
    return %arg0, %c0_i32 : i32, i32
  }
  func.func @transform_5(%arg0: i32, %arg1: i32, %arg2: i32) -> (i32, i32) {
    %c0_i32 = arith.constant 0 : i32
    %c0_i32_0 = arith.constant 0 : i32
    return %arg0, %c0_i32 : i32, i32
  }
  func.func @transform_6(%arg0: i32, %arg1: i32, %arg2: i32) -> (i32, i32, i32) {
    %c0_i32 = arith.constant 0 : i32
    %c0_i32_0 = arith.constant 0 : i32
    return %arg1, %arg0, %c0_i32 : i32, i32, i32
  }
  func.func @transform_7(%arg0: i32, %arg1: i32, %arg2: i32) -> (i32, i32, i32) {
    %c0_i32 = arith.constant 0 : i32
    %c0_i32_0 = arith.constant 0 : i32
    return %arg1, %arg0, %c0_i32 : i32, i32, i32
  }
  func.func @transform_8(%arg0: i32, %arg1: i32, %arg2: i32) -> (i32, i32, i32) {
    %c0_i32 = arith.constant 0 : i32
    %c0_i32_0 = arith.constant 0 : i32
    return %arg1, %arg0, %c0_i32 : i32, i32, i32
  }
}

</mosaic_0001>

<llo_original>
// kernel: tpu_custom_call.1
$region0: #{tpu_custom_call.1}
  #allocation0 [shape = 'u32[]', space=smem, size = 0x4, offset = 0x4, fixed_abs, tag = 'smem constant byte address 0x4 - core index']
  #allocation1 [shape = 'u32[144,128]{1,0:T(1,128)}', space=vmem, size = 0x12000, scoped, tag = 'internal scratch']
  #allocation2 [shape = 'f32[16,32]{1,0:T(8,128)}', space=vmem, size = 0x2000, scoped, tag = 'scratch operand']
  #allocation3 [shape = 'f32[16,32]{1,0:T(8,128)}', space=vmem, size = 0x2000, scoped, tag = 'scratch operand']
  #allocation4 [shape = 'f32[16,32]{1,0:T(8,128)}', space=vmem, size = 0x2000, scoped, tag = 'scratch operand']
  %s0 = inlined_call_operand.hbm [shape: bf16[16,32], index: 0, kind: input, shape index: {}]
  %s1 = inlined_call_operand.vmem [shape: bf16[32,32], index: 1, kind: input, shape index: {}]
  %s2 = inlined_call_operand.vmem [shape: bf16[32,32], index: 2, kind: input, shape index: {}]
  %s3 = inlined_call_operand.vmem [shape: bf16[32,32], index: 3, kind: input, shape index: {}]
  %s4 = inlined_call_operand.vmem [shape: f32[16,4], index: 4, kind: input, shape index: {}]
  %s5 = inlined_call_operand.vmem [shape: f32[16,4], index: 5, kind: input, shape index: {}]
  %s6 = inlined_call_operand.vmem [shape: bf16[4,16,8], index: 6, kind: output, shape index: {0}]
  %s7 = inlined_call_operand.vmem [shape: bf16[4,16,8], index: 7, kind: output, shape index: {1}]
  %s8 = inlined_call_operand.vmem [shape: bf16[4,16,8], index: 8, kind: output, shape index: {2}]
  %9 = xla_tuple %s6, %s7, %s8
  %s10 = sld [smem:[#allocation0]]
  $region62: #{tpu_custom_call.1} parent=0
    _
  %s12 = ssub.s32 1, %s10
  %s13 = scalar_select 0, %s12, %s10
  $region1: #{tpu_custom_call.1} parent=0
    #allocation5 [shape = 'u8[4096]{0}', space=vmem, size = 0x1000, scoped, tag = 'input window, operand 0, single buffered']
    #allocation6 [shape = 's32[1]{0}', space=sflag, size = 0x4, scoped, tag = 'scoped memory for tpu_custom_call.1']
    %14 = vsyncpa [#allocation6], 0
    // Predicated region
    $region2: #{tpu_custom_call.1} parent=1 // pred_check
      _
    $region3: #{tpu_custom_call.1} parent=1 // pred_check_branch
      %16 = sbr.rel (0) target = $region5
    $region4: #{tpu_custom_call.1} parent=1 // pred_region
      %s18 = ssub.s32 128, 128
      %19 = vsyncadd [#allocation6], %s18
      %s20 = sshll.u32 [#allocation5], 4
      %s21 = int_to_ptr.vmem [resolvable:$true] %s20
      %26 = dma.hbm_to_vmem [thread:$0]  %s0, 128, %s21, [#allocation6], 64, 64, 4
    $region5: #{tpu_custom_call.1} parent=1 // pred_fallthru
      _
    // Predicated region
    $region6: #{tpu_custom_call.1} parent=1 // pred_check
      _
    $region7: #{tpu_custom_call.1} parent=1 // pred_check_branch
      %28 = sbr.rel (0) target = $region9
    $region8: #{tpu_custom_call.1} parent=1 // pred_region
      _
    $region9: #{tpu_custom_call.1} parent=1 // pred_fallthru
      _
    // Predicated region
    $region10: #{tpu_custom_call.1} parent=1 // pred_check
      _
    $region11: #{tpu_custom_call.1} parent=1 // pred_check_branch
      %30 = sbr.rel (0) target = $region13
    $region12: #{tpu_custom_call.1} parent=1 // pred_region
      _
    $region13: #{tpu_custom_call.1} parent=1 // pred_fallthru
      _
    // Predicated region
    $region14: #{tpu_custom_call.1} parent=1 // pred_check
      _
    $region15: #{tpu_custom_call.1} parent=1 // pred_check_branch
      %32 = sbr.rel (0) target = $region17
    $region16: #{tpu_custom_call.1} parent=1 // pred_region
      _
    $region17: #{tpu_custom_call.1} parent=1 // pred_fallthru
      _
    // Predicated region
    $region18: #{tpu_custom_call.1} parent=1 // pred_check
      _
    $region19: #{tpu_custom_call.1} parent=1 // pred_check_branch
      %34 = sbr.rel (0) target = $region21
    $region20: #{tpu_custom_call.1} parent=1 // pred_region
      _
    $region21: #{tpu_custom_call.1} parent=1 // pred_fallthru
      _
    // Predicated region
    $region22: #{tpu_custom_call.1} parent=1 // pred_check
      _
    $region23: #{tpu_custom_call.1} parent=1 // pred_check_branch
      %36 = sbr.rel (0) target = $region25
    $region24: #{tpu_custom_call.1} parent=1 // pred_region
      _
    $region25: #{tpu_custom_call.1} parent=1 // pred_fallthru
      _
    // Predicated region
    $region26: #{tpu_custom_call.1} parent=1 // pred_check
      _
    $region27: #{tpu_custom_call.1} parent=1 // pred_check_branch
      %38 = sbr.rel (0) target = $region29
    $region28: #{tpu_custom_call.1} parent=1 // pred_region
      %39 = dma.done [#allocation6], 128
    $region29: #{tpu_custom_call.1} parent=1 // pred_fallthru
      _
    %p41 = scmp.eq.s32.totalorder 0, 0
    // Predicated region
    $region30: #{tpu_custom_call.1} parent=1 // pred_check
      %p42 = pneg %p41
    $region31: #{tpu_custom_call.1} parent=1 // pred_check_branch
      %44 = sbr.rel (%p42) target = $region33
    $region32: #{tpu_custom_call.1} parent=1 // pred_region
      %vm45 = vcmask 261120
      %46 = vst.msk [vmem:[#allocation2] sm:$0xff] %vm45, 0.0
      %47 = vst.msk [vmem:[#allocation2 + $0x8] sm:$0xff] %vm45, 0.0
      %48 = vst.msk [vmem:[#allocation3] sm:$0xff] %vm45, 0.0
      %49 = vst.msk [vmem:[#allocation3 + $0x8] sm:$0xff] %vm45, 0.0
      %50 = vst.msk [vmem:[#allocation4] sm:$0xff] %vm45, 0.0
      %51 = vst.msk [vmem:[#allocation4 + $0x8] sm:$0xff] %vm45, 0.0
    $region33: #{tpu_custom_call.1} parent=1 // pred_fallthru
      _
    %v52 = vld [vmem:[#allocation5] sm:$0xf]
    %v53 = vld [vmem:[#allocation5 + $0x4] sm:$0xf]
    %v54 = vld [vmem:[#allocation2] sm:$0xff]
    %v55 = vld [vmem:[#allocation2 + $0x8] sm:$0xff]
    %v56 = vld [vmem:[%s1] sm:$0xf]
    %v57 = vld [vmem:[%s1 + $0x4] sm:$0xf]
    %v58 = vld [vmem:[%s1 + $0x8] sm:$0xf]
    %v59 = vld [vmem:[%s1 + $0xc] sm:$0xf]
    %v62 = vunpack.c.l.b16 %v52
    %v63 = vunpack.c.l.b16 %v53
    %v64 = vpack.c.b16 %v63, %v62
    %v69 = vunpack.c.l.b16 %v56
    %v70 = vunpack.c.l.b16 %v57
    %v71 = vunpack.c.l.b16 %v58
    %v72 = vunpack.c.l.b16 %v59
    %v73 = vpack.c.b16 %v70, %v69
    %v74 = vpack.c.b16 %v72, %v71
    %vm77 = vcmask 261120
    %v79 = vsel %vm77, %v64, 0
    %81 = vmatprep.subr.bf16.mxu0 0
    %82 = vmatpush1.bf16.msra.mxu0 %v73
    %83 = vmatprep.subr.bf16.mxu0 0
    %84 = vmatpush1.bf16.msra.mxu0 %v74
    %85 = vmatprep.subr.bf16.mxu0 0
    %86 = vmatpush1.bf16.msra.mxu0 0
    %87 = vmatprep.subr.bf16.mxu0 0
    %88 = vmatpush1.bf16.msra.mxu0 0
    %89 = vmatprep.subr.bf16.mxu0 0
    %90 = vmatpush1.bf16.msra.mxu0 0
    %91 = vmatprep.subr.bf16.mxu0 0
    %92 = vmatpush1.bf16.msra.mxu0 0
    %93 = vmatprep.subr.bf16.mxu0 0
    %94 = vmatpush1.bf16.msra.mxu0 0
    %95 = vmatprep.subr.bf16.mxu0 0
    %96 = vmatpush1.bf16.msra.mxu0 0
    %97 = vmatprep.subr.bf16.mxu0 0
    %98 = vmatpush1.bf16.msra.mxu0 0
    %99 = vmatprep.subr.bf16.mxu0 0
    %100 = vmatpush1.bf16.msra.mxu0 0
    %101 = vmatprep.subr.bf16.mxu0 0
    %102 = vmatpush1.bf16.msra.mxu0 0
    %103 = vmatprep.subr.bf16.mxu0 0
    %104 = vmatpush1.bf16.msra.mxu0 0
    %105 = vmatprep.subr.bf16.mxu0 0
    %106 = vmatpush1.bf16.msra.mxu0 0
    %107 = vmatprep.subr.bf16.mxu0 0
    %108 = vmatpush1.bf16.msra.mxu0 0
    %109 = vmatprep.subr.bf16.mxu0 0
    %110 = vmatpush1.bf16.msra.mxu0 0
    %111 = vmatprep.subr.bf16.mxu0 0
    %112 = vmatpush1.bf16.msra.mxu0 0
    %113 = vmatprep.mubr.bf16.mxu0 0
    %114 = vmatmul.mubr.bf16.gmra.mrb[0].mxu0 %v79
    %v115 = vpop.f32.mrb[0].mxu0
    %v116 = vadd.f32 0.0, %v115
    %v117 = vpop.f32.mrb[0].mxu0
    %v118 = vpop.f32.mrb[0].mxu0
    %v119 = vadd.f32 0.0, %v118
    %v120 = vpop.f32.mrb[0].mxu0
    %121 = vdwg.mxu0
    %v122 = vadd.f32 %v54, %v116
    %v123 = vadd.f32 %v55, %v119
    %124 = vst.msk [vmem:[#allocation2] sm:$0xff] %vm77, %v122
    %125 = vst.msk [vmem:[#allocation2 + $0x8] sm:$0xff] %vm77, %v123
    %v126 = vld [vmem:[#allocation3] sm:$0xff]
    %v127 = vld [vmem:[#allocation3 + $0x8] sm:$0xff]
    %v128 = vld [vmem:[%s2] sm:$0xf]
    %v129 = vld [vmem:[%s2 + $0x4] sm:$0xf]
    %v130 = vld [vmem:[%s2 + $0x8] sm:$0xf]
    %v131 = vld [vmem:[%s2 + $0xc] sm:$0xf]
    %v136 = vunpack.c.l.b16 %v128
    %v137 = vunpack.c.l.b16 %v129
    %v138 = vunpack.c.l.b16 %v130
    %v139 = vunpack.c.l.b16 %v131
    %v140 = vpack.c.b16 %v137, %v136
    %v141 = vpack.c.b16 %v139, %v138
    %144 = vmatprep.subr.bf16.mxu0 0
    %145 = vmatpush1.bf16.msra.mxu0 %v140
    %146 = vmatprep.subr.bf16.mxu0 0
    %147 = vmatpush1.bf16.msra.mxu0 %v141
    %148 = vmatprep.subr.bf16.mxu0 0
    %149 = vmatpush1.bf16.msra.mxu0 0
    %150 = vmatprep.subr.bf16.mxu0 0
    %151 = vmatpush1.bf16.msra.mxu0 0
    %152 = vmatprep.subr.bf16.mxu0 0
    %153 = vmatpush1.bf16.msra.mxu0 0
    %154 = vmatprep.subr.bf16.mxu0 0
    %155 = vmatpush1.bf16.msra.mxu0 0
    %156 = vmatprep.subr.bf16.mxu0 0
    %157 = vmatpush1.bf16.msra.mxu0 0
    %158 = vmatprep.subr.bf16.mxu0 0
    %159 = vmatpush1.bf16.msra.mxu0 0
    %160 = vmatprep.subr.bf16.mxu0 0
    %161 = vmatpush1.bf16.msra.mxu0 0
    %162 = vmatprep.subr.bf16.mxu0 0
    %163 = vmatpush1.bf16.msra.mxu0 0
    %164 = vmatprep.subr.bf16.mxu0 0
    %165 = vmatpush1.bf16.msra.mxu0 0
    %166 = vmatprep.subr.bf16.mxu0 0
    %167 = vmatpush1.bf16.msra.mxu0 0
    %168 = vmatprep.subr.bf16.mxu0 0
    %169 = vmatpush1.bf16.msra.mxu0 0
    %170 = vmatprep.subr.bf16.mxu0 0
    %171 = vmatpush1.bf16.msra.mxu0 0
    %172 = vmatprep.subr.bf16.mxu0 0
    %173 = vmatpush1.bf16.msra.mxu0 0
    %174 = vmatprep.subr.bf16.mxu0 0
    %175 = vmatpush1.bf16.msra.mxu0 0
    %176 = vmatprep.mubr.bf16.mxu0 0
    %177 = vmatmul.mubr.bf16.gmra.mrb[0].mxu0 %v79
    %v178 = vpop.f32.mrb[0].mxu0
    %v179 = vadd.f32 0.0, %v178
    %v180 = vpop.f32.mrb[0].mxu0
    %v181 = vpop.f32.mrb[0].mxu0
    %v182 = vadd.f32 0.0, %v181
    %v183 = vpop.f32.mrb[0].mxu0
    %184 = vdwg.mxu0
    %v185 = vadd.f32 %v126, %v179
    %v186 = vadd.f32 %v127, %v182
    %187 = vst.msk [vmem:[#allocation3] sm:$0xff] %vm77, %v185
    %188 = vst.msk [vmem:[#allocation3 + $0x8] sm:$0xff] %vm77, %v186
    %v189 = vld [vmem:[#allocation4] sm:$0xff]
    %v190 = vld [vmem:[#allocation4 + $0x8] sm:$0xff]
    %v191 = vld [vmem:[%s3] sm:$0xf]
    %v192 = vld [vmem:[%s3 + $0x4] sm:$0xf]
    %v193 = vld [vmem:[%s3 + $0x8] sm:$0xf]
    %v194 = vld [vmem:[%s3 + $0xc] sm:$0xf]
    %v199 = vunpack.c.l.b16 %v191
    %v200 = vunpack.c.l.b16 %v192
    %v201 = vunpack.c.l.b16 %v193
    %v202 = vunpack.c.l.b16 %v194
    %v203 = vpack.c.b16 %v200, %v199
    %v204 = vpack.c.b16 %v202, %v201
    %207 = vmatprep.subr.bf16.mxu0 0
    %208 = vmatpush1.bf16.msra.mxu0 %v203
    %209 = vmatprep.subr.bf16.mxu0 0
    %210 = vmatpush1.bf16.msra.mxu0 %v204
    %211 = vmatprep.subr.bf16.mxu0 0
    %212 = vmatpush1.bf16.msra.mxu0 0
    %213 = vmatprep.subr.bf16.mxu0 0
    %214 = vmatpush1.bf16.msra.mxu0 0
    %215 = vmatprep.subr.bf16.mxu0 0
    %216 = vmatpush1.bf16.msra.mxu0 0
    %217 = vmatprep.subr.bf16.mxu0 0
    %218 = vmatpush1.bf16.msra.mxu0 0
    %219 = vmatprep.subr.bf16.mxu0 0
    %220 = vmatpush1.bf16.msra.mxu0 0
    %221 = vmatprep.subr.bf16.mxu0 0
    %222 = vmatpush1.bf16.msra.mxu0 0
    %223 = vmatprep.subr.bf16.mxu0 0
    %224 = vmatpush1.bf16.msra.mxu0 0
    %225 = vmatprep.subr.bf16.mxu0 0
    %226 = vmatpush1.bf16.msra.mxu0 0
    %227 = vmatprep.subr.bf16.mxu0 0
    %228 = vmatpush1.bf16.msra.mxu0 0
    %229 = vmatprep.subr.bf16.mxu0 0
    %230 = vmatpush1.bf16.msra.mxu0 0
    %231 = vmatprep.subr.bf16.mxu0 0
    %232 = vmatpush1.bf16.msra.mxu0 0
    %233 = vmatprep.subr.bf16.mxu0 0
    %234 = vmatpush1.bf16.msra.mxu0 0
    %235 = vmatprep.subr.bf16.mxu0 0
    %236 = vmatpush1.bf16.msra.mxu0 0
    %237 = vmatprep.subr.bf16.mxu0 0
    %238 = vmatpush1.bf16.msra.mxu0 0
    %239 = vmatprep.mubr.bf16.mxu0 0
    %240 = vmatmul.mubr.bf16.gmra.mrb[0].mxu0 %v79
    %v241 = vpop.f32.mrb[0].mxu0
    %v242 = vadd.f32 0.0, %v241
    %v243 = vpop.f32.mrb[0].mxu0
    %v244 = vpop.f32.mrb[0].mxu0
    %v245 = vadd.f32 0.0, %v244
    %v246 = vpop.f32.mrb[0].mxu0
    %247 = vdwg.mxu0
    %v248 = vadd.f32 %v189, %v242
    %v249 = vadd.f32 %v190, %v245
    %250 = vst.msk [vmem:[#allocation4] sm:$0xff] %vm77, %v248
    %251 = vst.msk [vmem:[#allocation4 + $0x8] sm:$0xff] %vm77, %v249
    // Predicated region
    $region34: #{tpu_custom_call.1} parent=1 // pred_check
      %p252 = pneg %p41
    $region35: #{tpu_custom_call.1} parent=1 // pred_check_branch
      %254 = sbr.rel (%p252) target = $region37
    $region36: #{tpu_custom_call.1} parent=1 // pred_region
      %v255 = vld [vmem:[%s4] sm:$0xff]
      %v256 = vld [vmem:[%s4 + $0x8] sm:$0xff]
      %v257 = vld [vmem:[%s5] sm:$0xff]
      %v258 = vld [vmem:[%s5 + $0x8] sm:$0xff]
      %v259 = vld [vmem:[#allocation2] sm:$0xff]
      %v260 = vld [vmem:[#allocation2 + $0x8] sm:$0xff]
      %v261 = vld [vmem:[#allocation3] sm:$0xff]
      %v262 = vld [vmem:[#allocation3 + $0x8] sm:$0xff]
      %v263 = vmul.f32 %v259, %v255
      %v264 = vmul.f32 %v260, %v256
      %267 = vrot.lane.b32.xlu0 %v257, 4
      %v268 = vpop.permute.xlu0 %267
      %269 = vrot.lane.b32.xlu0 %v258, 4
      %v270 = vpop.permute.xlu0 %269
      %v273 = vmul.f32 %v259, %v268
      %v274 = vmul.f32 %v260, %v270
      %277 = vrot.lane.b32.xlu0 %v273, 124
      %v278 = vpop.permute.xlu0 %277
      %279 = vrot.lane.b32.xlu0 %v274, 124
      %v280 = vpop.permute.xlu0 %279
      %v283 = vsub.f32 %v263, %v278
      %v284 = vsub.f32 %v264, %v280
      %v285 = vmul.f32 %v259, %v257
      %v286 = vmul.f32 %v260, %v258
      %289 = vrot.lane.b32.xlu0 %v255, 4
      %v290 = vpop.permute.xlu0 %289
      %291 = vrot.lane.b32.xlu0 %v256, 4
      %v292 = vpop.permute.xlu0 %291
      %v295 = vmul.f32 %v259, %v290
      %v296 = vmul.f32 %v260, %v292
      %299 = vrot.lane.b32.xlu0 %v295, 124
      %v300 = vpop.permute.xlu0 %299
      %301 = vrot.lane.b32.xlu0 %v296, 124
      %v302 = vpop.permute.xlu0 %301
      %v305 = vadd.f32 %v285, %v300
      %v306 = vadd.f32 %v286, %v302
      %309 = vrot.lane.b32.xlu0 %v305, 4
      %v310 = vpop.permute.xlu0 %309
      %311 = vrot.lane.b32.xlu0 %v306, 4
      %v312 = vpop.permute.xlu0 %311
      %vm315 = vcmask 31744
      %v316 = vsel %vm315, %v283, %v310
      %v317 = vsel %vm315, %v284, %v312
      %v318 = vmul.f32 %v261, %v255
      %v319 = vmul.f32 %v262, %v256
      %v320 = vmul.f32 %v261, %v268
      %v321 = vmul.f32 %v262, %v270
      %324 = vrot.lane.b32.xlu0 %v320, 124
      %v325 = vpop.permute.xlu0 %324
      %326 = vrot.lane.b32.xlu0 %v321, 124
      %v327 = vpop.permute.xlu0 %326
      %v330 = vsub.f32 %v318, %v325
      %v331 = vsub.f32 %v319, %v327
      %v332 = vmul.f32 %v261, %v257
      %v333 = vmul.f32 %v262, %v258
      %v334 = vmul.f32 %v261, %v290
      %v335 = vmul.f32 %v262, %v292
      %338 = vrot.lane.b32.xlu0 %v334, 124
      %v339 = vpop.permute.xlu0 %338
      %340 = vrot.lane.b32.xlu0 %v335, 124
      %v341 = vpop.permute.xlu0 %340
      %v344 = vadd.f32 %v332, %v339
      %v345 = vadd.f32 %v333, %v341
      %348 = vrot.lane.b32.xlu0 %v344, 4
      %v349 = vpop.permute.xlu0 %348
      %350 = vrot.lane.b32.xlu0 %v345, 4
      %v351 = vpop.permute.xlu0 %350
      %v354 = vsel %vm315, %v330, %v349
      %v355 = vsel %vm315, %v331, %v351
      %v356 = vpack.c.bf16 %v317, %v316
      %v358 = vunpack.c.l.b16 %v356
      %v359 = vunpack.c.h.b16 %v356
      %v360 = vpack.c.b16 %v358, %v358
      %v361 = vpack.c.b16 %v359, %v359
      %vm364 = vcmask 60416
      %365 = vst.msk [vmem:[%s6] sm:$0xf] %vm364, %v360
      %366 = vst.msk [vmem:[%s6 + $0x4] sm:$0xf] %vm364, %v361
      %v367 = vpack.c.bf16 %v355, %v354
      %v369 = vunpack.c.l.b16 %v367
      %v370 = vunpack.c.h.b16 %v367
      %v371 = vpack.c.b16 %v369, %v369
      %v372 = vpack.c.b16 %v370, %v370
      %375 = vst.msk [vmem:[%s7] sm:$0xf] %vm364, %v371
      %376 = vst.msk [vmem:[%s7 + $0x4] sm:$0xf] %vm364, %v372
      %v377 = vld [vmem:[#allocation4] sm:$0xff]
      %v378 = vld [vmem:[#allocation4 + $0x8] sm:$0xff]
      %v379 = vpack.c.bf16 %v378, %v377
      %v381 = vunpack.c.l.b16 %v379
      %v382 = vunpack.c.h.b16 %v379
      %v383 = vpack.c.b16 %v381, %v381
      %v384 = vpack.c.b16 %v382, %v382
      %387 = vst.msk [vmem:[%s8] sm:$0xf] %vm364, %v383
      %388 = vst.msk [vmem:[%s8 + $0x4] sm:$0xf] %vm364, %v384
      %v389 = vld [vmem:[#allocation2] sm:$0xff]
      %v390 = vld [vmem:[#allocation2 + $0x8] sm:$0xff]
      %v391 = vld [vmem:[#allocation3] sm:$0xff]
      %v392 = vld [vmem:[#allocation3 + $0x8] sm:$0xff]
      %393 = vrot.lane.b32.xlu0 %v255, 8
      %v394 = vpop.permute.xlu0 %393
      %395 = vrot.lane.b32.xlu0 %v256, 8
      %v396 = vpop.permute.xlu0 %395
      %v399 = vmul.f32 %v389, %v394
      %v400 = vmul.f32 %v390, %v396
      %401 = vrot.lane.b32.xlu0 %v257, 12
      %v402 = vpop.permute.xlu0 %401
      %403 = vrot.lane.b32.xlu0 %v258, 12
      %v404 = vpop.permute.xlu0 %403
      %v407 = vmul.f32 %v389, %v402
      %v408 = vmul.f32 %v390, %v404
      %411 = vrot.lane.b32.xlu0 %v407, 124
      %v412 = vpop.permute.xlu0 %411
      %413 = vrot.lane.b32.xlu0 %v408, 124
      %v414 = vpop.permute.xlu0 %413
      %v417 = vsub.f32 %v399, %v412
      %v418 = vsub.f32 %v400, %v414
      %419 = vrot.lane.b32.xlu0 %v257, 8
      %v420 = vpop.permute.xlu0 %419
      %421 = vrot.lane.b32.xlu0 %v258, 8
      %v422 = vpop.permute.xlu0 %421
      %v425 = vmul.f32 %v389, %v420
      %v426 = vmul.f32 %v390, %v422
      %427 = vrot.lane.b32.xlu0 %v255, 12
      %v428 = vpop.permute.xlu0 %427
      %429 = vrot.lane.b32.xlu0 %v256, 12
      %v430 = vpop.permute.xlu0 %429
      %v433 = vmul.f32 %v389, %v428
      %v434 = vmul.f32 %v390, %v430
      %437 = vrot.lane.b32.xlu0 %v433, 124
      %v438 = vpop.permute.xlu0 %437
      %439 = vrot.lane.b32.xlu0 %v434, 124
      %v440 = vpop.permute.xlu0 %439
      %v443 = vadd.f32 %v425, %v438
      %v444 = vadd.f32 %v426, %v440
      %447 = vrot.lane.b32.xlu0 %v417, 120
      %v448 = vpop.permute.xlu0 %447
      %449 = vrot.lane.b32.xlu0 %v418, 120
      %v450 = vpop.permute.xlu0 %449
      %455 = vrot.lane.b32.xlu0 %v443, 124
      %v456 = vpop.permute.xlu0 %455
      %457 = vrot.lane.b32.xlu0 %v444, 124
      %v458 = vpop.permute.xlu0 %457
      %v461 = vsel %vm315, %v448, %v456
      %v462 = vsel %vm315, %v450, %v458
      %v463 = vmul.f32 %v391, %v394
      %v464 = vmul.f32 %v392, %v396
      %v465 = vmul.f32 %v391, %v402
      %v466 = vmul.f32 %v392, %v404
      %469 = vrot.lane.b32.xlu0 %v465, 124
      %v470 = vpop.permute.xlu0 %469
      %471 = vrot.lane.b32.xlu0 %v466, 124
      %v472 = vpop.permute.xlu0 %471
      %v475 = vsub.f32 %v463, %v470
      %v476 = vsub.f32 %v464, %v472
      %v477 = vmul.f32 %v391, %v420
      %v478 = vmul.f32 %v392, %v422
      %v479 = vmul.f32 %v391, %v428
      %v480 = vmul.f32 %v392, %v430
      %483 = vrot.lane.b32.xlu0 %v479, 124
      %v484 = vpop.permute.xlu0 %483
      %485 = vrot.lane.b32.xlu0 %v480, 124
      %v486 = vpop.permute.xlu0 %485
      %v489 = vadd.f32 %v477, %v484
      %v490 = vadd.f32 %v478, %v486
      %493 = vrot.lane.b32.xlu0 %v475, 120
      %v494 = vpop.permute.xlu0 %493
      %495 = vrot.lane.b32.xlu0 %v476, 120
      %v496 = vpop.permute.xlu0 %495
      %501 = vrot.lane.b32.xlu0 %v489, 124
      %v502 = vpop.permute.xlu0 %501
      %503 = vrot.lane.b32.xlu0 %v490, 124
      %v504 = vpop.permute.xlu0 %503
      %v507 = vsel %vm315, %v494, %v502
      %v508 = vsel %vm315, %v496, %v504
      %v509 = vpack.c.bf16 %v462, %v461
      %v511 = vunpack.c.l.b16 %v509
      %v512 = vunpack.c.h.b16 %v509
      %v513 = vpack.c.b16 %v511, %v511
      %v514 = vpack.c.b16 %v512, %v512
      %s517 = scalar_lea.vmem %s6, 8
      %518 = vst.msk [vmem:[%s517] sm:$0xf] %vm364, %v513
      %519 = vst.msk [vmem:[%s517 + $0x4] sm:$0xf] %vm364, %v514
      %v520 = vpack.c.bf16 %v508, %v507
      %v522 = vunpack.c.l.b16 %v520
      %v523 = vunpack.c.h.b16 %v520
      %v524 = vpack.c.b16 %v522, %v522
      %v525 = vpack.c.b16 %v523, %v523
      %s528 = scalar_lea.vmem %s7, 8
      %529 = vst.msk [vmem:[%s528] sm:$0xf] %vm364, %v524
      %530 = vst.msk [vmem:[%s528 + $0x4] sm:$0xf] %vm364, %v525
      %v531 = vld [vmem:[#allocation4] sm:$0xff]
      %v532 = vld [vmem:[#allocation4 + $0x8] sm:$0xff]
      %v533 = vpack.c.bf16 %v532, %v531
      %v535 = vunpack.c.l.b16 %v533
      %v536 = vunpack.c.h.b16 %v533
      %v537 = vpack.c.b16 %v535, %v535
      %v538 = vpack.c.b16 %v536, %v536
      %539 = vrot.lane.b32.xlu0 %v537, 120
      %v540 = vpop.permute.xlu0 %539
      %541 = vrot.lane.b32.xlu0 %v538, 120
      %v542 = vpop.permute.xlu0 %541
      %s545 = scalar_lea.vmem %s8, 8
      %546 = vst.msk [vmem:[%s545] sm:$0xf] %vm364, %v540
      %547 = vst.msk [vmem:[%s545 + $0x4] sm:$0xf] %vm364, %v542
      %v548 = vld [vmem:[#allocation2] sm:$0xff]
      %v549 = vld [vmem:[#allocation2 + $0x8] sm:$0xff]
      %v550 = vld [vmem:[#allocation3] sm:$0xff]
      %v551 = vld [vmem:[#allocation3 + $0x8] sm:$0xff]
      %552 = vrot.lane.b32.xlu0 %v255, 16
      %v553 = vpop.permute.xlu0 %552
      %554 = vrot.lane.b32.xlu0 %v256, 16
      %v555 = vpop.permute.xlu0 %554
      %v558 = vmul.f32 %v548, %v553
      %v559 = vmul.f32 %v549, %v555
      %560 = vrot.lane.b32.xlu0 %v257, 20
      %v561 = vpop.permute.xlu0 %560
      %562 = vrot.lane.b32.xlu0 %v258, 20
      %v563 = vpop.permute.xlu0 %562
      %v566 = vmul.f32 %v548, %v561
      %v567 = vmul.f32 %v549, %v563
      %570 = vrot.lane.b32.xlu0 %v566, 124
      %v571 = vpop.permute.xlu0 %570
      %572 = vrot.lane.b32.xlu0 %v567, 124
      %v573 = vpop.permute.xlu0 %572
      %v576 = vsub.f32 %v558, %v571
      %v577 = vsub.f32 %v559, %v573
      %578 = vrot.lane.b32.xlu0 %v257, 16
      %v579 = vpop.permute.xlu0 %578
      %580 = vrot.lane.b32.xlu0 %v258, 16
      %v581 = vpop.permute.xlu0 %580
      %v584 = vmul.f32 %v548, %v579
      %v585 = vmul.f32 %v549, %v581
      %586 = vrot.lane.b32.xlu0 %v255, 20
      %v587 = vpop.permute.xlu0 %586
      %588 = vrot.lane.b32.xlu0 %v256, 20
      %v589 = vpop.permute.xlu0 %588
      %v592 = vmul.f32 %v548, %v587
      %v593 = vmul.f32 %v549, %v589
      %596 = vrot.lane.b32.xlu0 %v592, 124
      %v597 = vpop.permute.xlu0 %596
      %598 = vrot.lane.b32.xlu0 %v593, 124
      %v599 = vpop.permute.xlu0 %598
      %v602 = vadd.f32 %v584, %v597
      %v603 = vadd.f32 %v585, %v599
      %606 = vrot.lane.b32.xlu0 %v576, 112
      %v607 = vpop.permute.xlu0 %606
      %608 = vrot.lane.b32.xlu0 %v577, 112
      %v609 = vpop.permute.xlu0 %608
      %614 = vrot.lane.b32.xlu0 %v602, 116
      %v615 = vpop.permute.xlu0 %614
      %616 = vrot.lane.b32.xlu0 %v603, 116
      %v617 = vpop.permute.xlu0 %616
      %v620 = vsel %vm315, %v607, %v615
      %v621 = vsel %vm315, %v609, %v617
      %v622 = vmul.f32 %v550, %v553
      %v623 = vmul.f32 %v551, %v555
      %v624 = vmul.f32 %v550, %v561
      %v625 = vmul.f32 %v551, %v563
      %628 = vrot.lane.b32.xlu0 %v624, 124
      %v629 = vpop.permute.xlu0 %628
      %630 = vrot.lane.b32.xlu0 %v625, 124
      %v631 = vpop.permute.xlu0 %630
      %v634 = vsub.f32 %v622, %v629
      %v635 = vsub.f32 %v623, %v631
      %v636 = vmul.f32 %v550, %v579
      %v637 = vmul.f32 %v551, %v581
      %v638 = vmul.f32 %v550, %v587
      %v639 = vmul.f32 %v551, %v589
      %642 = vrot.lane.b32.xlu0 %v638, 124
      %v643 = vpop.permute.xlu0 %642
      %644 = vrot.lane.b32.xlu0 %v639, 124
      %v645 = vpop.permute.xlu0 %644
      %v648 = vadd.f32 %v636, %v643
      %v649 = vadd.f32 %v637, %v645
      %652 = vrot.lane.b32.xlu0 %v634, 112
      %v653 = vpop.permute.xlu0 %652
      %654 = vrot.lane.b32.xlu0 %v635, 112
      %v655 = vpop.permute.xlu0 %654
      %660 = vrot.lane.b32.xlu0 %v648, 116
      %v661 = vpop.permute.xlu0 %660
      %662 = vrot.lane.b32.xlu0 %v649, 116
      %v663 = vpop.permute.xlu0 %662
      %v666 = vsel %vm315, %v653, %v661
      %v667 = vsel %vm315, %v655, %v663
      %v668 = vpack.c.bf16 %v621, %v620
      %v670 = vunpack.c.l.b16 %v668
      %v671 = vunpack.c.h.b16 %v668
      %v672 = vpack.c.b16 %v670, %v670
      %v673 = vpack.c.b16 %v671, %v671
      %s676 = scalar_lea.vmem %s6, 16
      %677 = vst.msk [vmem:[%s676] sm:$0xf] %vm364, %v672
      %678 = vst.msk [vmem:[%s676 + $0x4] sm:$0xf] %vm364, %v673
      %v679 = vpack.c.bf16 %v667, %v666
      %v681 = vunpack.c.l.b16 %v679
      %v682 = vunpack.c.h.b16 %v679
      %v683 = vpack.c.b16 %v681, %v681
      %v684 = vpack.c.b16 %v682, %v682
      %s687 = scalar_lea.vmem %s7, 16
      %688 = vst.msk [vmem:[%s687] sm:$0xf] %vm364, %v683
      %689 = vst.msk [vmem:[%s687 + $0x4] sm:$0xf] %vm364, %v684
      %v690 = vld [vmem:[#allocation4] sm:$0xff]
      %v691 = vld [vmem:[#allocation4 + $0x8] sm:$0xff]
      %v692 = vpack.c.bf16 %v691, %v690
      %v694 = vunpack.c.l.b16 %v692
      %v695 = vunpack.c.h.b16 %v692
      %v696 = vpack.c.b16 %v694, %v694
      %v697 = vpack.c.b16 %v695, %v695
      %698 = vrot.lane.b32.xlu0 %v696, 112
      %v699 = vpop.permute.xlu0 %698
      %700 = vrot.lane.b32.xlu0 %v697, 112
      %v701 = vpop.permute.xlu0 %700
      %s704 = scalar_lea.vmem %s8, 16
      %705 = vst.msk [vmem:[%s704] sm:$0xf] %vm364, %v699
      %706 = vst.msk [vmem:[%s704 + $0x4] sm:$0xf] %vm364, %v701
      %v707 = vld [vmem:[#allocation2] sm:$0xff]
      %v708 = vld [vmem:[#allocation2 + $0x8] sm:$0xff]
      %v709 = vld [vmem:[#allocation3] sm:$0xff]
      %v710 = vld [vmem:[#allocation3 + $0x8] sm:$0xff]
      %711 = vrot.lane.b32.xlu0 %v255, 24
      %v712 = vpop.permute.xlu0 %711
      %713 = vrot.lane.b32.xlu0 %v256, 24
      %v714 = vpop.permute.xlu0 %713
      %v717 = vmul.f32 %v707, %v712
      %v718 = vmul.f32 %v708, %v714
      %719 = vrot.lane.b32.xlu0 %v257, 28
      %v720 = vpop.permute.xlu0 %719
      %721 = vrot.lane.b32.xlu0 %v258, 28
      %v722 = vpop.permute.xlu0 %721
      %v725 = vmul.f32 %v707, %v720
      %v726 = vmul.f32 %v708, %v722
      %729 = vrot.lane.b32.xlu0 %v725, 124
      %v730 = vpop.permute.xlu0 %729
      %731 = vrot.lane.b32.xlu0 %v726, 124
      %v732 = vpop.permute.xlu0 %731
      %v735 = vsub.f32 %v717, %v730
      %v736 = vsub.f32 %v718, %v732
      %737 = vrot.lane.b32.xlu0 %v257, 24
      %v738 = vpop.permute.xlu0 %737
      %739 = vrot.lane.b32.xlu0 %v258, 24
      %v740 = vpop.permute.xlu0 %739
      %v743 = vmul.f32 %v707, %v738
      %v744 = vmul.f32 %v708, %v740
      %745 = vrot.lane.b32.xlu0 %v255, 28
      %v746 = vpop.permute.xlu0 %745
      %747 = vrot.lane.b32.xlu0 %v256, 28
      %v748 = vpop.permute.xlu0 %747
      %v751 = vmul.f32 %v707, %v746
      %v752 = vmul.f32 %v708, %v748
      %755 = vrot.lane.b32.xlu0 %v751, 124
      %v756 = vpop.permute.xlu0 %755
      %757 = vrot.lane.b32.xlu0 %v752, 124
      %v758 = vpop.permute.xlu0 %757
      %v761 = vadd.f32 %v743, %v756
      %v762 = vadd.f32 %v744, %v758
      %765 = vrot.lane.b32.xlu0 %v735, 104
      %v766 = vpop.permute.xlu0 %765
      %767 = vrot.lane.b32.xlu0 %v736, 104
      %v768 = vpop.permute.xlu0 %767
      %773 = vrot.lane.b32.xlu0 %v761, 108
      %v774 = vpop.permute.xlu0 %773
      %775 = vrot.lane.b32.xlu0 %v762, 108
      %v776 = vpop.permute.xlu0 %775
      %v779 = vsel %vm315, %v766, %v774
      %v780 = vsel %vm315, %v768, %v776
      %v781 = vmul.f32 %v709, %v712
      %v782 = vmul.f32 %v710, %v714
      %v783 = vmul.f32 %v709, %v720
      %v784 = vmul.f32 %v710, %v722
      %787 = vrot.lane.b32.xlu0 %v783, 124
      %v788 = vpop.permute.xlu0 %787
      %789 = vrot.lane.b32.xlu0 %v784, 124
      %v790 = vpop.permute.xlu0 %789
      %v793 = vsub.f32 %v781, %v788
      %v794 = vsub.f32 %v782, %v790
      %v795 = vmul.f32 %v709, %v738
      %v796 = vmul.f32 %v710, %v740
      %v797 = vmul.f32 %v709, %v746
      %v798 = vmul.f32 %v710, %v748
      %801 = vrot.lane.b32.xlu0 %v797, 124
      %v802 = vpop.permute.xlu0 %801
      %803 = vrot.lane.b32.xlu0 %v798, 124
      %v804 = vpop.permute.xlu0 %803
      %v807 = vadd.f32 %v795, %v802
      %v808 = vadd.f32 %v796, %v804
      %811 = vrot.lane.b32.xlu0 %v793, 104
      %v812 = vpop.permute.xlu0 %811
      %813 = vrot.lane.b32.xlu0 %v794, 104
      %v814 = vpop.permute.xlu0 %813
      %819 = vrot.lane.b32.xlu0 %v807, 108
      %v820 = vpop.permute.xlu0 %819
      %821 = vrot.lane.b32.xlu0 %v808, 108
      %v822 = vpop.permute.xlu0 %821
      %v825 = vsel %vm315, %v812, %v820
      %v826 = vsel %vm315, %v814, %v822
      %v827 = vpack.c.bf16 %v780, %v779
      %v829 = vunpack.c.l.b16 %v827
      %v830 = vunpack.c.h.b16 %v827
      %v831 = vpack.c.b16 %v829, %v829
      %v832 = vpack.c.b16 %v830, %v830
      %s835 = scalar_lea.vmem %s6, 24
      %836 = vst.msk [vmem:[%s835] sm:$0xf] %vm364, %v831
      %837 = vst.msk [vmem:[%s835 + $0x4] sm:$0xf] %vm364, %v832
      %v838 = vpack.c.bf16 %v826, %v825
      %v840 = vunpack.c.l.b16 %v838
      %v841 = vunpack.c.h.b16 %v838
      %v842 = vpack.c.b16 %v840, %v840
      %v843 = vpack.c.b16 %v841, %v841
      %s846 = scalar_lea.vmem %s7, 24
      %847 = vst.msk [vmem:[%s846] sm:$0xf] %vm364, %v842
      %848 = vst.msk [vmem:[%s846 + $0x4] sm:$0xf] %vm364, %v843
      %v849 = vld [vmem:[#allocation4] sm:$0xff]
      %v850 = vld [vmem:[#allocation4 + $0x8] sm:$0xff]
      %v851 = vpack.c.bf16 %v850, %v849
      %v853 = vunpack.c.l.b16 %v851
      %v854 = vunpack.c.h.b16 %v851
      %v855 = vpack.c.b16 %v853, %v853
      %v856 = vpack.c.b16 %v854, %v854
      %857 = vrot.lane.b32.xlu0 %v855, 104
      %v858 = vpop.permute.xlu0 %857
      %859 = vrot.lane.b32.xlu0 %v856, 104
      %v860 = vpop.permute.xlu0 %859
      %s863 = scalar_lea.vmem %s8, 24
      %864 = vst.msk [vmem:[%s863] sm:$0xf] %vm364, %v858
      %865 = vst.msk [vmem:[%s863 + $0x4] sm:$0xf] %vm364, %v860
    $region37: #{tpu_custom_call.1} parent=1 // pred_fallthru
      _
    // Predicated region
    $region38: #{tpu_custom_call.1} parent=1 // pred_check
      _
    $region39: #{tpu_custom_call.1} parent=1 // pred_check_branch
      %867 = sbr.rel (0) target = $region41
    $region40: #{tpu_custom_call.1} parent=1 // pred_region
      _
    $region41: #{tpu_custom_call.1} parent=1 // pred_fallthru
      _
    // Predicated region
    $region42: #{tpu_custom_call.1} parent=1 // pred_check
      _
    $region43: #{tpu_custom_call.1} parent=1 // pred_check_branch
      %869 = sbr.rel (0) target = $region45
    $region44: #{tpu_custom_call.1} parent=1 // pred_region
      _
    $region45: #{tpu_custom_call.1} parent=1 // pred_fallthru
      _
    // Predicated region
    $region46: #{tpu_custom_call.1} parent=1 // pred_check
      _
    $region47: #{tpu_custom_call.1} parent=1 // pred_check_branch
      %871 = sbr.rel (0) target = $region49
    $region48: #{tpu_custom_call.1} parent=1 // pred_region
      _
    $region49: #{tpu_custom_call.1} parent=1 // pred_fallthru
      _
    // Predicated region
    $region50: #{tpu_custom_call.1} parent=1 // pred_check
      _
    $region51: #{tpu_custom_call.1} parent=1 // pred_check_branch
      %873 = sbr.rel (0) target = $region53
    $region52: #{tpu_custom_call.1} parent=1 // pred_region
      _
    $region53: #{tpu_custom_call.1} parent=1 // pred_fallthru
      _
    // Predicated region
    $region54: #{tpu_custom_call.1} parent=1 // pred_check
      _
    $region55: #{tpu_custom_call.1} parent=1 // pred_check_branch
      %875 = sbr.rel (0) target = $region57
    $region56: #{tpu_custom_call.1} parent=1 // pred_region
      _
    $region57: #{tpu_custom_call.1} parent=1 // pred_fallthru
      _
    // Predicated region
    $region58: #{tpu_custom_call.1} parent=1 // pred_check
      _
    $region59: #{tpu_custom_call.1} parent=1 // pred_check_branch
      %877 = sbr.rel (0) target = $region61
    $region60: #{tpu_custom_call.1} parent=1 // pred_region
      _
    $region61: #{tpu_custom_call.1} parent=1 // pred_fallthru
      _
    %878 = vsyncpa [#allocation6], 1

</llo_original>
